<compile_context>
chip_gen: v7x
topology: tpu7x:2x2x1
jax: 0.10.0
libtpu: 0.0.40
codegen_flags: <defaults>
</compile_context>

<pallas_src>
import functools

import jax
import jax.numpy as jnp
from jax import lax
from jax.experimental import pallas as pl
from jax.experimental.pallas import tpu as pltpu


def _round_up(n, m):
    return ((n + m - 1) // m) * m


def lstm_fc_kernel(x_ref, state_ref, w_ref, fc_ref, pred_ref, hc_ref, *,
                   seq_len, batch_p, hidden, input_size,
                   hh_off, b_off, fc_b_off):
    """Whole LSTM + fc forward in one invocation.

    x_ref:     (T*Bp, I)        time-major inputs (batch padded to Bp)
    state_ref: (2*Bp, H)        rows [0:Bp)=h0, [Bp:2Bp)=c0
    w_ref:     (W_ROWS, 4H)     rows [0:I)=W_ih^T, [hh_off:hh_off+H)=W_hh^T,
                                row b_off = b_ih + b_hh   (aligned offsets)
    fc_ref:    (FC_ROWS, O)     rows [0:H)=W_fc^T, row fc_b_off = b_fc
    pred_ref:  (T*Bp, O)
    hc_ref:    (2*Bp, H)        rows [0:Bp)=h_T, [Bp:2Bp)=c_T
    """
    T, Bp, H, I = seq_len, batch_p, hidden, input_size

    # Hoisted, loop-invariant loads (single DMA-backed VMEM reads each).
    x = x_ref[...]                                    # (T*Bp, I)
    w = w_ref[...]                                    # (W_ROWS, 4H)
    fc = fc_ref[...]                                  # (FC_ROWS, O)
    wih = w[0:I, :]                                   # (I, 4H)
    whh = w[hh_off:hh_off + H, :]                     # (H, 4H)
    b = w[b_off:b_off + 1, :]                         # (1, 4H) = b_ih + b_hh
    wfc = fc[0:H, :]                                  # (H, O)
    bfc = fc[fc_b_off:fc_b_off + 1, :]                # (1, O)

    h = state_ref[0:Bp, :].astype(jnp.float32)        # (Bp, H)
    c = state_ref[Bp:2 * Bp, :].astype(jnp.float32)   # (Bp, H)

    # Time-parallel input projection for ALL steps in one MXU call
    # (off the serial path).
    xg = jnp.dot(x.astype(jnp.float32), wih,
                 preferred_element_type=jnp.float32) + b          # (T*Bp, 4H)

    # Serial recurrence, fully unrolled (T static and small). Only the small
    # h @ W_hh^T matmul + gate elementwise math remain on the critical path.
    hs = []
    for t in range(T):
        gates = (xg[t * Bp:(t + 1) * Bp, :]
                 + jnp.dot(h, whh, preferred_element_type=jnp.float32))  # (Bp,4H)
        # Two EUP pushes per step (full-register sigmoid + tanh), then slice
        # PyTorch gate order i, f, g, o out of the results.
        sig = jax.nn.sigmoid(gates)                   # (Bp, 4H)
        tnh = jnp.tanh(gates)                         # (Bp, 4H)
        i_g = sig[:, 0 * H:1 * H]
        f_g = sig[:, 1 * H:2 * H]
        g_g = tnh[:, 2 * H:3 * H]
        o_g = sig[:, 3 * H:4 * H]
        c = f_g * c + i_g * g_g
        h = o_g * jnp.tanh(c)
        hs.append(h)                                  # stays in vregs

    # fc projection off the serial path: one (T*Bp, H) @ (H, O) matmul and a
    # single lane-contiguous output store.
    h_all = jnp.concatenate(hs, axis=0)               # (T*Bp, H)
    pred = jnp.dot(h_all, wfc, preferred_element_type=jnp.float32) + bfc
    pred_ref[...] = pred.astype(pred_ref.dtype)

    # Merged final-state output (one store, one DMA).
    hc_ref[...] = jnp.concatenate([h, c], axis=0).astype(hc_ref.dtype)


def my_lstm_forward(x, hidden, params):
    """x: (B, T, I) float32; hidden = (h0, c0) each (1, B, H).

    Returns (prediction (B, T, O), (h_T (1, B, H), c_T (1, B, H))),
    matching torch.nn.LSTM(batch_first=True) followed by nn.Linear.
    """
    h0, c0 = hidden
    B, T, I = x.shape
    H = h0.shape[-1]
    O = params["w_fc"].shape[0]

    # Pad batch to the f32 sublane tile so every per-step slice is aligned.
    Bp = max(8, _round_up(B, 8))

    # Time-major flat slab (T*Bp, I).
    x_p = jnp.pad(x, ((0, Bp - B), (0, 0), (0, 0)))           # (Bp, T, I)
    x_tm = jnp.transpose(x_p, (1, 0, 2)).reshape(T * Bp, I)   # (T*Bp, I)

    # State slab: rows [0:Bp) = h0, [Bp:2Bp) = c0.
    h0_p = jnp.pad(h0.reshape(B, H), ((0, Bp - B), (0, 0)))
    c0_p = jnp.pad(c0.reshape(B, H), ((0, Bp - B), (0, 0)))
    state = jnp.concatenate([h0_p, c0_p], axis=0)             # (2*Bp, H)

    # Packed LSTM weight slab; each section starts at a sublane-aligned row.
    hh_off = _round_up(I, 8)
    b_off = hh_off + _round_up(H, 8)
    w_rows = b_off + 8
    w_slab = jnp.zeros((w_rows, 4 * H), jnp.float32)
    w_slab = w_slab.at[0:I].set(params["w_ih"].T)
    w_slab = w_slab.at[hh_off:hh_off + H].set(params["w_hh"].T)
    w_slab = w_slab.at[b_off].set(params["b_ih"] + params["b_hh"])

    # Packed fc slab.
    fc_b_off = _round_up(H, 8)
    fc_rows = fc_b_off + 8
    fc_slab = jnp.zeros((fc_rows, O), jnp.float32)
    fc_slab = fc_slab.at[0:H].set(params["w_fc"].T)
    fc_slab = fc_slab.at[fc_b_off].set(params["b_fc"])

    kernel = functools.partial(
        lstm_fc_kernel,
        seq_len=T, batch_p=Bp, hidden=H, input_size=I,
        hh_off=hh_off, b_off=b_off, fc_b_off=fc_b_off)

    vmem = pl.BlockSpec(memory_space=pltpu.MemorySpace.VMEM)
    pred_tm, hc = pl.pallas_call(
        kernel,
        out_shape=(
            jax.ShapeDtypeStruct((T * Bp, O), x.dtype),
            jax.ShapeDtypeStruct((2 * Bp, H), x.dtype),
        ),
        in_specs=[vmem, vmem, vmem, vmem],
        out_specs=(vmem, vmem),
    )(x_tm, state, w_slab, fc_slab)

    # Unpad / restore PyTorch conventions.
    prediction = jnp.transpose(
        pred_tm.reshape(T, Bp, O)[:, :B, :], (1, 0, 2))        # (B, T, O)
    hN = hc[0:B, :].reshape(1, B, H)
    cN = hc[Bp:Bp + B, :].reshape(1, B, H)
    return prediction, (hN, cN)


def my_lstm_reference(x, hidden, params):
    """Pure-JAX reference matching torch.nn.LSTM(batch_first=True) + Linear."""
    h0, c0 = hidden
    B, T, I = x.shape
    H = h0.shape[-1]
    w_ih, w_hh = params["w_ih"], params["w_hh"]
    b = params["b_ih"] + params["b_hh"]

    def step(carry, x_t):
        h, c = carry
        gates = x_t @ w_ih.T + h @ w_hh.T + b
        i = jax.nn.sigmoid(gates[:, 0 * H:1 * H])
        f = jax.nn.sigmoid(gates[:, 1 * H:2 * H])
        g = jnp.tanh(gates[:, 2 * H:3 * H])
        o = jax.nn.sigmoid(gates[:, 3 * H:4 * H])
        c_new = f * c + i * g
        h_new = o * jnp.tanh(c_new)
        return (h_new, c_new), h_new

    (hT, cT), hs = lax.scan(step, (h0[0], c0[0]), jnp.transpose(x, (1, 0, 2)))
    lstm_out = jnp.transpose(hs, (1, 0, 2))            # (B, T, H)
    pred = lstm_out @ params["w_fc"].T + params["b_fc"]
    return pred, (hT[None], cT[None])


def init_params(key, input_size, hidden_size, output_size):
    """PyTorch-style uniform(-1/sqrt(H), 1/sqrt(H)) init, deterministic."""
    k_lstm = 1.0 / jnp.sqrt(hidden_size)
    k_fc = 1.0 / jnp.sqrt(hidden_size)
    keys = jax.random.split(key, 6)
    u = lambda k, shape, s: jax.random.uniform(k, shape, jnp.float32, -s, s)
    return {
        "w_ih": u(keys[0], (4 * hidden_size, input_size), k_lstm),
        "w_hh": u(keys[1], (4 * hidden_size, hidden_size), k_lstm),
        "b_ih": u(keys[2], (4 * hidden_size,), k_lstm),
        "b_hh": u(keys[3], (4 * hidden_size,), k_lstm),
        "w_fc": u(keys[4], (output_size, hidden_size), k_fc),
        "b_fc": u(keys[5], (output_size,), k_fc),
    }


if __name__ == "__main__":
    INPUT_SIZE, HIDDEN_SIZE, OUTPUT_SIZE = 4, 32, 8
    B, T = 2, 8

    key = jax.random.PRNGKey(0)
    k_x, k_h, k_c, k_p = jax.random.split(key, 4)

    x = jax.random.normal(k_x, (B, T, INPUT_SIZE), jnp.float32)
    h0 = jax.random.normal(k_h, (1, B, HIDDEN_SIZE), jnp.float32)
    c0 = jax.random.normal(k_c, (1, B, HIDDEN_SIZE), jnp.float32)
    params = init_params(k_p, INPUT_SIZE, HIDDEN_SIZE, OUTPUT_SIZE)

    fwd = jax.jit(functools.partial(my_lstm_forward, params=params))
    pred, (hT, cT) = fwd(x, (h0, c0))
    jax.block_until_ready((pred, hT, cT))

    # Sanity check against a pure-JAX reference (all-f32 kernel -> tight tol).
    pred_ref, (hT_ref, cT_ref) = my_lstm_reference(x, (h0, c0), params)
    assert pred.shape == (B, T, OUTPUT_SIZE)
    assert hT.shape == (1, B, HIDDEN_SIZE) and cT.shape == (1, B, HIDDEN_SIZE)
    assert jnp.allclose(pred, pred_ref, rtol=1e-4, atol=1e-4)
    assert jnp.allclose(hT, hT_ref, rtol=1e-4, atol=1e-4)
    assert jnp.allclose(cT, cT_ref, rtol=1e-4, atol=1e-4)

    print("KERNEL_OK")
</pallas_src>

<mosaic_0001>
module attributes {stable_mosaic.version = 11 : i64} {
  func.func @lstm_fc_kernel(%arg0: memref<64x4xf32, #tpu.memory_space<vmem>>, %arg1: memref<16x32xf32, #tpu.memory_space<vmem>>, %arg2: memref<48x128xf32, #tpu.memory_space<vmem>>, %arg3: memref<40x8xf32, #tpu.memory_space<vmem>>, %arg4: memref<64x8xf32, #tpu.memory_space<vmem>>, %arg5: memref<16x32xf32, #tpu.memory_space<vmem>>) attributes {dimension_semantics = [], scalar_prefetch = 0 : i64, scratch_operands = 0 : i64, tpu.core_type = #tpu.core_type<tc>} {
    %c0 = arith.constant 0 : index
    %c0_0 = arith.constant 0 : index
    %0 = vector.load %arg0[%c0, %c0_0] : memref<64x4xf32, #tpu.memory_space<vmem>>, vector<64x4xf32>
    %c0_1 = arith.constant 0 : index
    %c0_2 = arith.constant 0 : index
    %1 = vector.load %arg2[%c0_1, %c0_2] : memref<48x128xf32, #tpu.memory_space<vmem>>, vector<48x128xf32>
    %c0_3 = arith.constant 0 : index
    %c0_4 = arith.constant 0 : index
    %2 = vector.load %arg3[%c0_3, %c0_4] : memref<40x8xf32, #tpu.memory_space<vmem>>, vector<40x8xf32>
    %3 = vector.extract_strided_slice %1 {offsets = [0, 0], sizes = [4, 128], strides = [1, 1]} : vector<48x128xf32> to vector<4x128xf32>
    %4 = vector.extract_strided_slice %1 {offsets = [8, 0], sizes = [32, 128], strides = [1, 1]} : vector<48x128xf32> to vector<32x128xf32>
    %5 = vector.extract_strided_slice %1 {offsets = [40, 0], sizes = [1, 128], strides = [1, 1]} : vector<48x128xf32> to vector<1x128xf32>
    %6 = vector.extract_strided_slice %2 {offsets = [0, 0], sizes = [32, 8], strides = [1, 1]} : vector<40x8xf32> to vector<32x8xf32>
    %7 = vector.extract_strided_slice %2 {offsets = [32, 0], sizes = [1, 8], strides = [1, 1]} : vector<40x8xf32> to vector<1x8xf32>
    %c0_5 = arith.constant 0 : index
    %c0_6 = arith.constant 0 : index
    %8 = vector.load %arg1[%c0_5, %c0_6] : memref<16x32xf32, #tpu.memory_space<vmem>>, vector<8x32xf32>
    %c8 = arith.constant 8 : index
    %c0_7 = arith.constant 0 : index
    %9 = vector.load %arg1[%c8, %c0_7] : memref<16x32xf32, #tpu.memory_space<vmem>>, vector<8x32xf32>
    %cst = arith.constant dense<0.000000e+00> : vector<64x128xf32>
    %10 = tpu.matmul %0, %3, %cst {dimension_numbers = #tpu.dot_dimension_numbers<[1], [0], [0], [1], [0, 0, 1, 1], [], []>} : vector<64x4xf32>, vector<4x128xf32>, vector<64x128xf32> -> vector<64x128xf32>
    %11 = vector.broadcast %5 : vector<1x128xf32> to vector<64x128xf32>
    %12 = arith.addf %10, %11 : vector<64x128xf32>
    %13 = vector.extract_strided_slice %12 {offsets = [0, 0], sizes = [8, 128], strides = [1, 1]} : vector<64x128xf32> to vector<8x128xf32>
    %cst_8 = arith.constant dense<0.000000e+00> : vector<8x128xf32>
    %14 = tpu.matmul %8, %4, %cst_8 {dimension_numbers = #tpu.dot_dimension_numbers<[1], [0], [0], [1], [0, 0, 1, 1], [], []>} : vector<8x32xf32>, vector<32x128xf32>, vector<8x128xf32> -> vector<8x128xf32>
    %15 = arith.addf %13, %14 : vector<8x128xf32>
    %16 = arith.negf %15 : vector<8x128xf32>
    %17 = math.exp %16 : vector<8x128xf32>
    %cst_9 = arith.constant 1.000000e+00 : f32
    %18 = vector.broadcast %cst_9 : f32 to vector<8x128xf32>
    %19 = arith.addf %18, %17 : vector<8x128xf32>
    %20 = arith.divf %18, %19 : vector<8x128xf32>
    %21 = math.tanh %15 : vector<8x128xf32>
    %22 = vector.extract_strided_slice %20 {offsets = [0, 0], sizes = [8, 32], strides = [1, 1]} : vector<8x128xf32> to vector<8x32xf32>
    %23 = vector.extract_strided_slice %20 {offsets = [0, 32], sizes = [8, 32], strides = [1, 1]} : vector<8x128xf32> to vector<8x32xf32>
    %24 = vector.extract_strided_slice %21 {offsets = [0, 64], sizes = [8, 32], strides = [1, 1]} : vector<8x128xf32> to vector<8x32xf32>
    %25 = vector.extract_strided_slice %20 {offsets = [0, 96], sizes = [8, 32], strides = [1, 1]} : vector<8x128xf32> to vector<8x32xf32>
    %26 = arith.mulf %23, %9 : vector<8x32xf32>
    %27 = arith.mulf %22, %24 : vector<8x32xf32>
    %28 = arith.addf %26, %27 : vector<8x32xf32>
    %29 = math.tanh %28 : vector<8x32xf32>
    %30 = arith.mulf %25, %29 : vector<8x32xf32>
    %31 = vector.extract_strided_slice %12 {offsets = [8, 0], sizes = [8, 128], strides = [1, 1]} : vector<64x128xf32> to vector<8x128xf32>
    %cst_10 = arith.constant dense<0.000000e+00> : vector<8x128xf32>
    %32 = tpu.matmul %30, %4, %cst_10 {dimension_numbers = #tpu.dot_dimension_numbers<[1], [0], [0], [1], [0, 0, 1, 1], [], []>} : vector<8x32xf32>, vector<32x128xf32>, vector<8x128xf32> -> vector<8x128xf32>
    %33 = arith.addf %31, %32 : vector<8x128xf32>
    %34 = arith.negf %33 : vector<8x128xf32>
    %35 = math.exp %34 : vector<8x128xf32>
    %cst_11 = arith.constant 1.000000e+00 : f32
    %36 = vector.broadcast %cst_11 : f32 to vector<8x128xf32>
    %37 = arith.addf %36, %35 : vector<8x128xf32>
    %38 = arith.divf %36, %37 : vector<8x128xf32>
    %39 = math.tanh %33 : vector<8x128xf32>
    %40 = vector.extract_strided_slice %38 {offsets = [0, 0], sizes = [8, 32], strides = [1, 1]} : vector<8x128xf32> to vector<8x32xf32>
    %41 = vector.extract_strided_slice %38 {offsets = [0, 32], sizes = [8, 32], strides = [1, 1]} : vector<8x128xf32> to vector<8x32xf32>
    %42 = vector.extract_strided_slice %39 {offsets = [0, 64], sizes = [8, 32], strides = [1, 1]} : vector<8x128xf32> to vector<8x32xf32>
    %43 = vector.extract_strided_slice %38 {offsets = [0, 96], sizes = [8, 32], strides = [1, 1]} : vector<8x128xf32> to vector<8x32xf32>
    %44 = arith.mulf %41, %28 : vector<8x32xf32>
    %45 = arith.mulf %40, %42 : vector<8x32xf32>
    %46 = arith.addf %44, %45 : vector<8x32xf32>
    %47 = math.tanh %46 : vector<8x32xf32>
    %48 = arith.mulf %43, %47 : vector<8x32xf32>
    %49 = vector.extract_strided_slice %12 {offsets = [16, 0], sizes = [8, 128], strides = [1, 1]} : vector<64x128xf32> to vector<8x128xf32>
    %cst_12 = arith.constant dense<0.000000e+00> : vector<8x128xf32>
    %50 = tpu.matmul %48, %4, %cst_12 {dimension_numbers = #tpu.dot_dimension_numbers<[1], [0], [0], [1], [0, 0, 1, 1], [], []>} : vector<8x32xf32>, vector<32x128xf32>, vector<8x128xf32> -> vector<8x128xf32>
    %51 = arith.addf %49, %50 : vector<8x128xf32>
    %52 = arith.negf %51 : vector<8x128xf32>
    %53 = math.exp %52 : vector<8x128xf32>
    %cst_13 = arith.constant 1.000000e+00 : f32
    %54 = vector.broadcast %cst_13 : f32 to vector<8x128xf32>
    %55 = arith.addf %54, %53 : vector<8x128xf32>
    %56 = arith.divf %54, %55 : vector<8x128xf32>
    %57 = math.tanh %51 : vector<8x128xf32>
    %58 = vector.extract_strided_slice %56 {offsets = [0, 0], sizes = [8, 32], strides = [1, 1]} : vector<8x128xf32> to vector<8x32xf32>
    %59 = vector.extract_strided_slice %56 {offsets = [0, 32], sizes = [8, 32], strides = [1, 1]} : vector<8x128xf32> to vector<8x32xf32>
    %60 = vector.extract_strided_slice %57 {offsets = [0, 64], sizes = [8, 32], strides = [1, 1]} : vector<8x128xf32> to vector<8x32xf32>
    %61 = vector.extract_strided_slice %56 {offsets = [0, 96], sizes = [8, 32], strides = [1, 1]} : vector<8x128xf32> to vector<8x32xf32>
    %62 = arith.mulf %59, %46 : vector<8x32xf32>
    %63 = arith.mulf %58, %60 : vector<8x32xf32>
    %64 = arith.addf %62, %63 : vector<8x32xf32>
    %65 = math.tanh %64 : vector<8x32xf32>
    %66 = arith.mulf %61, %65 : vector<8x32xf32>
    %67 = vector.extract_strided_slice %12 {offsets = [24, 0], sizes = [8, 128], strides = [1, 1]} : vector<64x128xf32> to vector<8x128xf32>
    %cst_14 = arith.constant dense<0.000000e+00> : vector<8x128xf32>
    %68 = tpu.matmul %66, %4, %cst_14 {dimension_numbers = #tpu.dot_dimension_numbers<[1], [0], [0], [1], [0, 0, 1, 1], [], []>} : vector<8x32xf32>, vector<32x128xf32>, vector<8x128xf32> -> vector<8x128xf32>
    %69 = arith.addf %67, %68 : vector<8x128xf32>
    %70 = arith.negf %69 : vector<8x128xf32>
    %71 = math.exp %70 : vector<8x128xf32>
    %cst_15 = arith.constant 1.000000e+00 : f32
    %72 = vector.broadcast %cst_15 : f32 to vector<8x128xf32>
    %73 = arith.addf %72, %71 : vector<8x128xf32>
    %74 = arith.divf %72, %73 : vector<8x128xf32>
    %75 = math.tanh %69 : vector<8x128xf32>
    %76 = vector.extract_strided_slice %74 {offsets = [0, 0], sizes = [8, 32], strides = [1, 1]} : vector<8x128xf32> to vector<8x32xf32>
    %77 = vector.extract_strided_slice %74 {offsets = [0, 32], sizes = [8, 32], strides = [1, 1]} : vector<8x128xf32> to vector<8x32xf32>
    %78 = vector.extract_strided_slice %75 {offsets = [0, 64], sizes = [8, 32], strides = [1, 1]} : vector<8x128xf32> to vector<8x32xf32>
    %79 = vector.extract_strided_slice %74 {offsets = [0, 96], sizes = [8, 32], strides = [1, 1]} : vector<8x128xf32> to vector<8x32xf32>
    %80 = arith.mulf %77, %64 : vector<8x32xf32>
    %81 = arith.mulf %76, %78 : vector<8x32xf32>
    %82 = arith.addf %80, %81 : vector<8x32xf32>
    %83 = math.tanh %82 : vector<8x32xf32>
    %84 = arith.mulf %79, %83 : vector<8x32xf32>
    %85 = vector.extract_strided_slice %12 {offsets = [32, 0], sizes = [8, 128], strides = [1, 1]} : vector<64x128xf32> to vector<8x128xf32>
    %cst_16 = arith.constant dense<0.000000e+00> : vector<8x128xf32>
    %86 = tpu.matmul %84, %4, %cst_16 {dimension_numbers = #tpu.dot_dimension_numbers<[1], [0], [0], [1], [0, 0, 1, 1], [], []>} : vector<8x32xf32>, vector<32x128xf32>, vector<8x128xf32> -> vector<8x128xf32>
    %87 = arith.addf %85, %86 : vector<8x128xf32>
    %88 = arith.negf %87 : vector<8x128xf32>
    %89 = math.exp %88 : vector<8x128xf32>
    %cst_17 = arith.constant 1.000000e+00 : f32
    %90 = vector.broadcast %cst_17 : f32 to vector<8x128xf32>
    %91 = arith.addf %90, %89 : vector<8x128xf32>
    %92 = arith.divf %90, %91 : vector<8x128xf32>
    %93 = math.tanh %87 : vector<8x128xf32>
    %94 = vector.extract_strided_slice %92 {offsets = [0, 0], sizes = [8, 32], strides = [1, 1]} : vector<8x128xf32> to vector<8x32xf32>
    %95 = vector.extract_strided_slice %92 {offsets = [0, 32], sizes = [8, 32], strides = [1, 1]} : vector<8x128xf32> to vector<8x32xf32>
    %96 = vector.extract_strided_slice %93 {offsets = [0, 64], sizes = [8, 32], strides = [1, 1]} : vector<8x128xf32> to vector<8x32xf32>
    %97 = vector.extract_strided_slice %92 {offsets = [0, 96], sizes = [8, 32], strides = [1, 1]} : vector<8x128xf32> to vector<8x32xf32>
    %98 = arith.mulf %95, %82 : vector<8x32xf32>
    %99 = arith.mulf %94, %96 : vector<8x32xf32>
    %100 = arith.addf %98, %99 : vector<8x32xf32>
    %101 = math.tanh %100 : vector<8x32xf32>
    %102 = arith.mulf %97, %101 : vector<8x32xf32>
    %103 = vector.extract_strided_slice %12 {offsets = [40, 0], sizes = [8, 128], strides = [1, 1]} : vector<64x128xf32> to vector<8x128xf32>
    %cst_18 = arith.constant dense<0.000000e+00> : vector<8x128xf32>
    %104 = tpu.matmul %102, %4, %cst_18 {dimension_numbers = #tpu.dot_dimension_numbers<[1], [0], [0], [1], [0, 0, 1, 1], [], []>} : vector<8x32xf32>, vector<32x128xf32>, vector<8x128xf32> -> vector<8x128xf32>
    %105 = arith.addf %103, %104 : vector<8x128xf32>
    %106 = arith.negf %105 : vector<8x128xf32>
    %107 = math.exp %106 : vector<8x128xf32>
    %cst_19 = arith.constant 1.000000e+00 : f32
    %108 = vector.broadcast %cst_19 : f32 to vector<8x128xf32>
    %109 = arith.addf %108, %107 : vector<8x128xf32>
    %110 = arith.divf %108, %109 : vector<8x128xf32>
    %111 = math.tanh %105 : vector<8x128xf32>
    %112 = vector.extract_strided_slice %110 {offsets = [0, 0], sizes = [8, 32], strides = [1, 1]} : vector<8x128xf32> to vector<8x32xf32>
    %113 = vector.extract_strided_slice %110 {offsets = [0, 32], sizes = [8, 32], strides = [1, 1]} : vector<8x128xf32> to vector<8x32xf32>
    %114 = vector.extract_strided_slice %111 {offsets = [0, 64], sizes = [8, 32], strides = [1, 1]} : vector<8x128xf32> to vector<8x32xf32>
    %115 = vector.extract_strided_slice %110 {offsets = [0, 96], sizes = [8, 32], strides = [1, 1]} : vector<8x128xf32> to vector<8x32xf32>
    %116 = arith.mulf %113, %100 : vector<8x32xf32>
    %117 = arith.mulf %112, %114 : vector<8x32xf32>
    %118 = arith.addf %116, %117 : vector<8x32xf32>
    %119 = math.tanh %118 : vector<8x32xf32>
    %120 = arith.mulf %115, %119 : vector<8x32xf32>
    %121 = vector.extract_strided_slice %12 {offsets = [48, 0], sizes = [8, 128], strides = [1, 1]} : vector<64x128xf32> to vector<8x128xf32>
    %cst_20 = arith.constant dense<0.000000e+00> : vector<8x128xf32>
    %122 = tpu.matmul %120, %4, %cst_20 {dimension_numbers = #tpu.dot_dimension_numbers<[1], [0], [0], [1], [0, 0, 1, 1], [], []>} : vector<8x32xf32>, vector<32x128xf32>, vector<8x128xf32> -> vector<8x128xf32>
    %123 = arith.addf %121, %122 : vector<8x128xf32>
    %124 = arith.negf %123 : vector<8x128xf32>
    %125 = math.exp %124 : vector<8x128xf32>
    %cst_21 = arith.constant 1.000000e+00 : f32
    %126 = vector.broadcast %cst_21 : f32 to vector<8x128xf32>
    %127 = arith.addf %126, %125 : vector<8x128xf32>
    %128 = arith.divf %126, %127 : vector<8x128xf32>
    %129 = math.tanh %123 : vector<8x128xf32>
    %130 = vector.extract_strided_slice %128 {offsets = [0, 0], sizes = [8, 32], strides = [1, 1]} : vector<8x128xf32> to vector<8x32xf32>
    %131 = vector.extract_strided_slice %128 {offsets = [0, 32], sizes = [8, 32], strides = [1, 1]} : vector<8x128xf32> to vector<8x32xf32>
    %132 = vector.extract_strided_slice %129 {offsets = [0, 64], sizes = [8, 32], strides = [1, 1]} : vector<8x128xf32> to vector<8x32xf32>
    %133 = vector.extract_strided_slice %128 {offsets = [0, 96], sizes = [8, 32], strides = [1, 1]} : vector<8x128xf32> to vector<8x32xf32>
    %134 = arith.mulf %131, %118 : vector<8x32xf32>
    %135 = arith.mulf %130, %132 : vector<8x32xf32>
    %136 = arith.addf %134, %135 : vector<8x32xf32>
    %137 = math.tanh %136 : vector<8x32xf32>
    %138 = arith.mulf %133, %137 : vector<8x32xf32>
    %139 = vector.extract_strided_slice %12 {offsets = [56, 0], sizes = [8, 128], strides = [1, 1]} : vector<64x128xf32> to vector<8x128xf32>
    %cst_22 = arith.constant dense<0.000000e+00> : vector<8x128xf32>
    %140 = tpu.matmul %138, %4, %cst_22 {dimension_numbers = #tpu.dot_dimension_numbers<[1], [0], [0], [1], [0, 0, 1, 1], [], []>} : vector<8x32xf32>, vector<32x128xf32>, vector<8x128xf32> -> vector<8x128xf32>
    %141 = arith.addf %139, %140 : vector<8x128xf32>
    %142 = arith.negf %141 : vector<8x128xf32>
    %143 = math.exp %142 : vector<8x128xf32>
    %cst_23 = arith.constant 1.000000e+00 : f32
    %144 = vector.broadcast %cst_23 : f32 to vector<8x128xf32>
    %145 = arith.addf %144, %143 : vector<8x128xf32>
    %146 = arith.divf %144, %145 : vector<8x128xf32>
    %147 = math.tanh %141 : vector<8x128xf32>
    %148 = vector.extract_strided_slice %146 {offsets = [0, 0], sizes = [8, 32], strides = [1, 1]} : vector<8x128xf32> to vector<8x32xf32>
    %149 = vector.extract_strided_slice %146 {offsets = [0, 32], sizes = [8, 32], strides = [1, 1]} : vector<8x128xf32> to vector<8x32xf32>
    %150 = vector.extract_strided_slice %147 {offsets = [0, 64], sizes = [8, 32], strides = [1, 1]} : vector<8x128xf32> to vector<8x32xf32>
    %151 = vector.extract_strided_slice %146 {offsets = [0, 96], sizes = [8, 32], strides = [1, 1]} : vector<8x128xf32> to vector<8x32xf32>
    %152 = arith.mulf %149, %136 : vector<8x32xf32>
    %153 = arith.mulf %148, %150 : vector<8x32xf32>
    %154 = arith.addf %152, %153 : vector<8x32xf32>
    %155 = math.tanh %154 : vector<8x32xf32>
    %156 = arith.mulf %151, %155 : vector<8x32xf32>
    %157 = tpu.concatenate %30, %48, %66, %84, %102, %120, %138, %156 in 0 : vector<8x32xf32>, vector<8x32xf32>, vector<8x32xf32>, vector<8x32xf32>, vector<8x32xf32>, vector<8x32xf32>, vector<8x32xf32>, vector<8x32xf32> -> vector<64x32xf32>
    %cst_24 = arith.constant dense<0.000000e+00> : vector<64x8xf32>
    %158 = tpu.matmul %157, %6, %cst_24 {dimension_numbers = #tpu.dot_dimension_numbers<[1], [0], [0], [1], [0, 0, 1, 1], [], []>} : vector<64x32xf32>, vector<32x8xf32>, vector<64x8xf32> -> vector<64x8xf32>
    %159 = vector.broadcast %7 : vector<1x8xf32> to vector<64x8xf32>
    %160 = arith.addf %158, %159 : vector<64x8xf32>
    %c0_25 = arith.constant 0 : index
    %c0_26 = arith.constant 0 : index
    %161 = vector.load %arg4[%c0_25, %c0_26] : memref<64x8xf32, #tpu.memory_space<vmem>>, vector<64x8xf32>
    tpu.vector_store %arg4[%c0_25, %c0_26], %160 {strides = array<i32>} : memref<64x8xf32, #tpu.memory_space<vmem>>, vector<64x8xf32>,
    %162 = tpu.concatenate %156, %154 in 0 : vector<8x32xf32>, vector<8x32xf32> -> vector<16x32xf32>
    %c0_27 = arith.constant 0 : index
    %c0_28 = arith.constant 0 : index
    %163 = vector.load %arg5[%c0_27, %c0_28] : memref<16x32xf32, #tpu.memory_space<vmem>>, vector<16x32xf32>
    tpu.vector_store %arg5[%c0_27, %c0_28], %162 {strides = array<i32>} : memref<16x32xf32, #tpu.memory_space<vmem>>, vector<16x32xf32>,
    return
  }
}

</mosaic_0001>

<llo_original>
// kernel: my_lstm_forward.1
$region0: #{my_lstm_forward.1}
  #allocation0 [shape = 'u32[]', space=smem, size = 0x4, offset = 0x4, fixed_abs, tag = 'smem constant byte address 0x4 - core index']
  #allocation1 [shape = 'u32[144,128]{1,0:T(1,128)}', space=vmem, size = 0x12000, scoped, tag = 'internal scratch']
  %s0 = inlined_call_operand.vmem [shape: f32[64,4], index: 0, kind: input, shape index: {}]
  %s1 = inlined_call_operand.vmem [shape: f32[16,32], index: 1, kind: input, shape index: {}]
  %s2 = inlined_call_operand.vmem [shape: f32[48,128], index: 2, kind: input, shape index: {}]
  %s3 = inlined_call_operand.vmem [shape: f32[40,8], index: 3, kind: input, shape index: {}]
  %s4 = inlined_call_operand.vmem [shape: f32[64,8], index: 4, kind: output, shape index: {0}]
  %s5 = inlined_call_operand.vmem [shape: f32[16,32], index: 5, kind: output, shape index: {1}]
  %6 = xla_tuple %s4, %s5
  %s7 = sld [smem:[#allocation0]]
  $region34: #{my_lstm_forward.1} parent=0
    _
  %s9 = ssub.s32 1, %s7
  %s10 = scalar_select 0, %s9, %s7
  // Predicated region
  $region2: #{my_lstm_forward.1} parent=0 // pred_check
    _
  $region3: #{my_lstm_forward.1} parent=0 // pred_check_branch
    %12 = sbr.rel (0) target = $region5
  $region4: #{my_lstm_forward.1} parent=0 // pred_region
    _
  $region5: #{my_lstm_forward.1} parent=0 // pred_fallthru
    _
  // Predicated region
  $region6: #{my_lstm_forward.1} parent=0 // pred_check
    _
  $region7: #{my_lstm_forward.1} parent=0 // pred_check_branch
    %14 = sbr.rel (0) target = $region9
  $region8: #{my_lstm_forward.1} parent=0 // pred_region
    _
  $region9: #{my_lstm_forward.1} parent=0 // pred_fallthru
    _
  // Predicated region
  $region10: #{my_lstm_forward.1} parent=0 // pred_check
    _
  $region11: #{my_lstm_forward.1} parent=0 // pred_check_branch
    %16 = sbr.rel (0) target = $region13
  $region12: #{my_lstm_forward.1} parent=0 // pred_region
    _
  $region13: #{my_lstm_forward.1} parent=0 // pred_fallthru
    _
  // Predicated region
  $region14: #{my_lstm_forward.1} parent=0 // pred_check
    _
  $region15: #{my_lstm_forward.1} parent=0 // pred_check_branch
    %18 = sbr.rel (0) target = $region17
  $region16: #{my_lstm_forward.1} parent=0 // pred_region
    _
  $region17: #{my_lstm_forward.1} parent=0 // pred_fallthru
    _
  %v19 = vld [vmem:[%s0] sm:$0xff]
  %v20 = vld [vmem:[%s0 + $0x8] sm:$0xff]
  %v21 = vld [vmem:[%s0 + $0x10] sm:$0xff]
  %v22 = vld [vmem:[%s0 + $0x18] sm:$0xff]
  %v23 = vld [vmem:[%s0 + $0x20] sm:$0xff]
  %v24 = vld [vmem:[%s0 + $0x28] sm:$0xff]
  %v25 = vld [vmem:[%s0 + $0x30] sm:$0xff]
  %v26 = vld [vmem:[%s0 + $0x38] sm:$0xff]
  %v27 = vld [vmem:[%s2] sm:$0xff]
  %v28 = vld [vmem:[%s2 + $0x8] sm:$0xff]
  %v29 = vld [vmem:[%s2 + $0x10] sm:$0xff]
  %v30 = vld [vmem:[%s2 + $0x18] sm:$0xff]
  %v31 = vld [vmem:[%s2 + $0x20] sm:$0xff]
  %v32 = vld [vmem:[%s2 + $0x28] sm:$0xff]
  %v33 = vld [vmem:[%s3] sm:$0xff]
  %v34 = vld [vmem:[%s3 + $0x8] sm:$0xff]
  %v35 = vld [vmem:[%s3 + $0x10] sm:$0xff]
  %v36 = vld [vmem:[%s3 + $0x18] sm:$0xff]
  %v37 = vld [vmem:[%s3 + $0x20] sm:$0xff]
  %v38 = vld [vmem:[%s1] sm:$0xff]
  %v39 = vld [vmem:[%s1 + $0x8] sm:$0xff]
  %v40 = vlaneseq
  %v41 = vshrl.u32 %v40, 7
  %v42 = vsub.s32 0, %v41
  %v43 = vrot.slane %v32, %v42
  %vm44 = vcmask 31744
  %v46 = vsel %vm44, %v19, 0
  %v49 = vsel %vm44, %v20, 0
  %v52 = vsel %vm44, %v21, 0
  %v55 = vsel %vm44, %v22, 0
  %v58 = vsel %vm44, %v23, 0
  %v61 = vsel %vm44, %v24, 0
  %v64 = vsel %vm44, %v25, 0
  %v67 = vsel %vm44, %v26, 0
  %vm69 = vcmask 1043456
  %v71 = vsel %vm69, %v27, 0
  %73 = vmatprep.subr.mxu0 0.0
  %74 = vmatpush1.msra.mxu0 %v71
  %75 = vmatprep.subr.mxu0 0.0
  %76 = vmatpush1.msra.mxu0 0.0
  %77 = vmatprep.subr.mxu0 0.0
  %78 = vmatpush1.msra.mxu0 0.0
  %79 = vmatprep.subr.mxu0 0.0
  %80 = vmatpush1.msra.mxu0 0.0
  %81 = vmatprep.subr.mxu0 0.0
  %82 = vmatpush1.msra.mxu0 0.0
  %83 = vmatprep.subr.mxu0 0.0
  %84 = vmatpush1.msra.mxu0 0.0
  %85 = vmatprep.subr.mxu0 0.0
  %86 = vmatpush1.msra.mxu0 0.0
  %87 = vmatprep.subr.mxu0 0.0
  %88 = vmatpush1.msra.mxu0 0.0
  %89 = vmatprep.subr.mxu0 0.0
  %90 = vmatpush1.msra.mxu0 0.0
  %91 = vmatprep.subr.mxu0 0.0
  %92 = vmatpush1.msra.mxu0 0.0
  %93 = vmatprep.subr.mxu0 0.0
  %94 = vmatpush1.msra.mxu0 0.0
  %95 = vmatprep.subr.mxu0 0.0
  %96 = vmatpush1.msra.mxu0 0.0
  %97 = vmatprep.subr.mxu0 0.0
  %98 = vmatpush1.msra.mxu0 0.0
  %99 = vmatprep.subr.mxu0 0.0
  %100 = vmatpush1.msra.mxu0 0.0
  %101 = vmatprep.subr.mxu0 0.0
  %102 = vmatpush1.msra.mxu0 0.0
  %103 = vmatprep.subr.mxu0 0.0
  %104 = vmatpush1.msra.mxu0 0.0
  %105 = vmatprep.subr.mxu0 0.0
  %106 = vmatpush1.msra.mxu0 0.0
  %107 = vmatprep.subr.mxu0 0.0
  %108 = vmatpush1.msra.mxu0 0.0
  %109 = vmatprep.subr.mxu0 0.0
  %110 = vmatpush1.msra.mxu0 0.0
  %111 = vmatprep.subr.mxu0 0.0
  %112 = vmatpush1.msra.mxu0 0.0
  %113 = vmatprep.subr.mxu0 0.0
  %114 = vmatpush1.msra.mxu0 0.0
  %115 = vmatprep.subr.mxu0 0.0
  %116 = vmatpush1.msra.mxu0 0.0
  %117 = vmatprep.subr.mxu0 0.0
  %118 = vmatpush1.msra.mxu0 0.0
  %119 = vmatprep.subr.mxu0 0.0
  %120 = vmatpush1.msra.mxu0 0.0
  %121 = vmatprep.subr.mxu0 0.0
  %122 = vmatpush1.msra.mxu0 0.0
  %123 = vmatprep.subr.mxu0 0.0
  %124 = vmatpush1.msra.mxu0 0.0
  %125 = vmatprep.subr.mxu0 0.0
  %126 = vmatpush1.msra.mxu0 0.0
  %127 = vmatprep.subr.mxu0 0.0
  %128 = vmatpush1.msra.mxu0 0.0
  %129 = vmatprep.subr.mxu0 0.0
  %130 = vmatpush1.msra.mxu0 0.0
  %131 = vmatprep.subr.mxu0 0.0
  %132 = vmatpush1.msra.mxu0 0.0
  %133 = vmatprep.subr.mxu0 0.0
  %134 = vmatpush1.msra.mxu0 0.0
  %135 = vmatprep.subr.mxu0 0.0
  %136 = vmatpush1.msra.mxu0 0.0
  %137 = vmatprep.mubr.f32.mxu0 0.0
  %138 = vmatmul.mubr.f32.gmra.mrb[0].mxu0 %v46
  %v139 = vpop.f32.mrb[0].mxu0
  %v140 = vadd.f32 %v43, %v139
  %v141 = vpop.f32.mrb[0].mxu0
  %142 = vmatprep.mubr.f32.mxu0 0.0
  %143 = vmatmul.mubr.f32.gmra.mrb[0].mxu0 %v49
  %v144 = vpop.f32.mrb[0].mxu0
  %v145 = vadd.f32 %v43, %v144
  %v146 = vpop.f32.mrb[0].mxu0
  %147 = vmatprep.mubr.f32.mxu0 0.0
  %148 = vmatmul.mubr.f32.gmra.mrb[0].mxu0 %v52
  %v149 = vpop.f32.mrb[0].mxu0
  %v150 = vadd.f32 %v43, %v149
  %v151 = vpop.f32.mrb[0].mxu0
  %152 = vmatprep.mubr.f32.mxu0 0.0
  %153 = vmatmul.mubr.f32.gmra.mrb[0].mxu0 %v55
  %v154 = vpop.f32.mrb[0].mxu0
  %v155 = vadd.f32 %v43, %v154
  %v156 = vpop.f32.mrb[0].mxu0
  %157 = vmatprep.mubr.f32.mxu0 0.0
  %158 = vmatmul.mubr.f32.gmra.mrb[0].mxu0 %v58
  %v159 = vpop.f32.mrb[0].mxu0
  %v160 = vadd.f32 %v43, %v159
  %v161 = vpop.f32.mrb[0].mxu0
  %162 = vmatprep.mubr.f32.mxu0 0.0
  %163 = vmatmul.mubr.f32.gmra.mrb[0].mxu0 %v61
  %v164 = vpop.f32.mrb[0].mxu0
  %v165 = vadd.f32 %v43, %v164
  %v166 = vpop.f32.mrb[0].mxu0
  %167 = vmatprep.mubr.f32.mxu0 0.0
  %168 = vmatmul.mubr.f32.gmra.mrb[0].mxu0 %v64
  %v169 = vpop.f32.mrb[0].mxu0
  %v170 = vadd.f32 %v43, %v169
  %v171 = vpop.f32.mrb[0].mxu0
  %172 = vmatprep.mubr.f32.mxu0 0.0
  %173 = vmatmul.mubr.f32.gmra.mrb[0].mxu0 %v67
  %v174 = vpop.f32.mrb[0].mxu0
  %v175 = vadd.f32 %v43, %v174
  %v176 = vpop.f32.mrb[0].mxu0
  %177 = vdwg.mxu0
  %vm178 = vcmask 261120
  %v180 = vsel %vm178, %v38, 0
  %182 = vmatprep.subr.mxu0 0.0
  %183 = vmatpush1.msra.mxu0 %v28
  %184 = vmatprep.subr.mxu0 0.0
  %185 = vmatpush1.msra.mxu0 %v29
  %186 = vmatprep.subr.mxu0 0.0
  %187 = vmatpush1.msra.mxu0 %v30
  %188 = vmatprep.subr.mxu0 0.0
  %189 = vmatpush1.msra.mxu0 %v31
  %190 = vmatprep.subr.mxu0 0.0
  %191 = vmatpush1.msra.mxu0 0.0
  %192 = vmatprep.subr.mxu0 0.0
  %193 = vmatpush1.msra.mxu0 0.0
  %194 = vmatprep.subr.mxu0 0.0
  %195 = vmatpush1.msra.mxu0 0.0
  %196 = vmatprep.subr.mxu0 0.0
  %197 = vmatpush1.msra.mxu0 0.0
  %198 = vmatprep.subr.mxu0 0.0
  %199 = vmatpush1.msra.mxu0 0.0
  %200 = vmatprep.subr.mxu0 0.0
  %201 = vmatpush1.msra.mxu0 0.0
  %202 = vmatprep.subr.mxu0 0.0
  %203 = vmatpush1.msra.mxu0 0.0
  %204 = vmatprep.subr.mxu0 0.0
  %205 = vmatpush1.msra.mxu0 0.0
  %206 = vmatprep.subr.mxu0 0.0
  %207 = vmatpush1.msra.mxu0 0.0
  %208 = vmatprep.subr.mxu0 0.0
  %209 = vmatpush1.msra.mxu0 0.0
  %210 = vmatprep.subr.mxu0 0.0
  %211 = vmatpush1.msra.mxu0 0.0
  %212 = vmatprep.subr.mxu0 0.0
  %213 = vmatpush1.msra.mxu0 0.0
  %214 = vmatprep.subr.mxu0 0.0
  %215 = vmatpush1.msra.mxu0 0.0
  %216 = vmatprep.subr.mxu0 0.0
  %217 = vmatpush1.msra.mxu0 0.0
  %218 = vmatprep.subr.mxu0 0.0
  %219 = vmatpush1.msra.mxu0 0.0
  %220 = vmatprep.subr.mxu0 0.0
  %221 = vmatpush1.msra.mxu0 0.0
  %222 = vmatprep.subr.mxu0 0.0
  %223 = vmatpush1.msra.mxu0 0.0
  %224 = vmatprep.subr.mxu0 0.0
  %225 = vmatpush1.msra.mxu0 0.0
  %226 = vmatprep.subr.mxu0 0.0
  %227 = vmatpush1.msra.mxu0 0.0
  %228 = vmatprep.subr.mxu0 0.0
  %229 = vmatpush1.msra.mxu0 0.0
  %230 = vmatprep.subr.mxu0 0.0
  %231 = vmatpush1.msra.mxu0 0.0
  %232 = vmatprep.subr.mxu0 0.0
  %233 = vmatpush1.msra.mxu0 0.0
  %234 = vmatprep.subr.mxu0 0.0
  %235 = vmatpush1.msra.mxu0 0.0
  %236 = vmatprep.subr.mxu0 0.0
  %237 = vmatpush1.msra.mxu0 0.0
  %238 = vmatprep.subr.mxu0 0.0
  %239 = vmatpush1.msra.mxu0 0.0
  %240 = vmatprep.subr.mxu0 0.0
  %241 = vmatpush1.msra.mxu0 0.0
  %242 = vmatprep.subr.mxu0 0.0
  %243 = vmatpush1.msra.mxu0 0.0
  %244 = vmatprep.subr.mxu0 0.0
  %245 = vmatpush1.msra.mxu0 0.0
  %246 = vmatprep.mubr.f32.mxu0 0.0
  %247 = vmatmul.mubr.f32.gmra.mrb[0].mxu0 %v180
  %v248 = vpop.f32.mrb[0].mxu0
  %v249 = vadd.f32 0.0, %v248
  %v250 = vpop.f32.mrb[0].mxu0
  %251 = vdwg.mxu0
  %v252 = vadd.f32 %v140, %v249
  %v253 = vxor.u32 %v252, 2147483648
  %v254 = vmul.f32 %v253, 1.442695
  %v255 = vpow.pop %v254
  %v256 = vadd.f32 %v255, 1.0
  %v257 = vrcp.pop %v256
  %v258 = vmul.f32 1.0, %v257
  %v259 = vtanh.pop %v252
  %261 = vrot.lane.b32.xlu0 %v39, 32
  %v262 = vpop.permute.xlu0 %261
  %v264 = vmul.f32 %v258, %v262
  %266 = vrot.lane.b32.xlu0 %v259, 64
  %v267 = vpop.permute.xlu0 %266
  %v269 = vmul.f32 %v258, %v267
  %271 = vrot.lane.b32.xlu0 %v269, 32
  %v272 = vpop.permute.xlu0 %271
  %v274 = vadd.f32 %v264, %v272
  %v275 = vtanh.pop %v274
  %277 = vrot.lane.b32.xlu0 %v275, 64
  %v278 = vpop.permute.xlu0 %277
  %v280 = vmul.f32 %v258, %v278
  %282 = vrot.lane.b32.xlu0 %v280, 32
  %v283 = vpop.permute.xlu0 %282
  %v284 = vsel %vm178, %v283, 0
  %286 = vmatprep.subr.mxu0 0.0
  %287 = vmatpush1.msra.mxu0 %v28
  %288 = vmatprep.subr.mxu0 0.0
  %289 = vmatpush1.msra.mxu0 %v29
  %290 = vmatprep.subr.mxu0 0.0
  %291 = vmatpush1.msra.mxu0 %v30
  %292 = vmatprep.subr.mxu0 0.0
  %293 = vmatpush1.msra.mxu0 %v31
  %294 = vmatprep.subr.mxu0 0.0
  %295 = vmatpush1.msra.mxu0 0.0
  %296 = vmatprep.subr.mxu0 0.0
  %297 = vmatpush1.msra.mxu0 0.0
  %298 = vmatprep.subr.mxu0 0.0
  %299 = vmatpush1.msra.mxu0 0.0
  %300 = vmatprep.subr.mxu0 0.0
  %301 = vmatpush1.msra.mxu0 0.0
  %302 = vmatprep.subr.mxu0 0.0
  %303 = vmatpush1.msra.mxu0 0.0
  %304 = vmatprep.subr.mxu0 0.0
  %305 = vmatpush1.msra.mxu0 0.0
  %306 = vmatprep.subr.mxu0 0.0
  %307 = vmatpush1.msra.mxu0 0.0
  %308 = vmatprep.subr.mxu0 0.0
  %309 = vmatpush1.msra.mxu0 0.0
  %310 = vmatprep.subr.mxu0 0.0
  %311 = vmatpush1.msra.mxu0 0.0
  %312 = vmatprep.subr.mxu0 0.0
  %313 = vmatpush1.msra.mxu0 0.0
  %314 = vmatprep.subr.mxu0 0.0
  %315 = vmatpush1.msra.mxu0 0.0
  %316 = vmatprep.subr.mxu0 0.0
  %317 = vmatpush1.msra.mxu0 0.0
  %318 = vmatprep.subr.mxu0 0.0
  %319 = vmatpush1.msra.mxu0 0.0
  %320 = vmatprep.subr.mxu0 0.0
  %321 = vmatpush1.msra.mxu0 0.0
  %322 = vmatprep.subr.mxu0 0.0
  %323 = vmatpush1.msra.mxu0 0.0
  %324 = vmatprep.subr.mxu0 0.0
  %325 = vmatpush1.msra.mxu0 0.0
  %326 = vmatprep.subr.mxu0 0.0
  %327 = vmatpush1.msra.mxu0 0.0
  %328 = vmatprep.subr.mxu0 0.0
  %329 = vmatpush1.msra.mxu0 0.0
  %330 = vmatprep.subr.mxu0 0.0
  %331 = vmatpush1.msra.mxu0 0.0
  %332 = vmatprep.subr.mxu0 0.0
  %333 = vmatpush1.msra.mxu0 0.0
  %334 = vmatprep.subr.mxu0 0.0
  %335 = vmatpush1.msra.mxu0 0.0
  %336 = vmatprep.subr.mxu0 0.0
  %337 = vmatpush1.msra.mxu0 0.0
  %338 = vmatprep.subr.mxu0 0.0
  %339 = vmatpush1.msra.mxu0 0.0
  %340 = vmatprep.subr.mxu0 0.0
  %341 = vmatpush1.msra.mxu0 0.0
  %342 = vmatprep.subr.mxu0 0.0
  %343 = vmatpush1.msra.mxu0 0.0
  %344 = vmatprep.subr.mxu0 0.0
  %345 = vmatpush1.msra.mxu0 0.0
  %346 = vmatprep.subr.mxu0 0.0
  %347 = vmatpush1.msra.mxu0 0.0
  %348 = vmatprep.subr.mxu0 0.0
  %349 = vmatpush1.msra.mxu0 0.0
  %350 = vmatprep.mubr.f32.mxu0 0.0
  %351 = vmatmul.mubr.f32.gmra.mrb[0].mxu0 %v284
  %v352 = vpop.f32.mrb[0].mxu0
  %v353 = vadd.f32 0.0, %v352
  %v354 = vpop.f32.mrb[0].mxu0
  %355 = vdwg.mxu0
  %v356 = vadd.f32 %v145, %v353
  %v357 = vxor.u32 %v356, 2147483648
  %v358 = vmul.f32 %v357, 1.442695
  %v359 = vpow.pop %v358
  %v360 = vadd.f32 %v359, 1.0
  %v361 = vrcp.pop %v360
  %v362 = vmul.f32 1.0, %v361
  %v363 = vtanh.pop %v356
  %v364 = vmul.f32 %v362, %v274
  %366 = vrot.lane.b32.xlu0 %v363, 64
  %v367 = vpop.permute.xlu0 %366
  %v369 = vmul.f32 %v362, %v367
  %371 = vrot.lane.b32.xlu0 %v369, 32
  %v372 = vpop.permute.xlu0 %371
  %v374 = vadd.f32 %v364, %v372
  %v375 = vtanh.pop %v374
  %377 = vrot.lane.b32.xlu0 %v375, 64
  %v378 = vpop.permute.xlu0 %377
  %v380 = vmul.f32 %v362, %v378
  %382 = vrot.lane.b32.xlu0 %v380, 32
  %v383 = vpop.permute.xlu0 %382
  %v384 = vsel %vm178, %v383, 0
  %386 = vmatprep.subr.mxu0 0.0
  %387 = vmatpush1.msra.mxu0 %v28
  %388 = vmatprep.subr.mxu0 0.0
  %389 = vmatpush1.msra.mxu0 %v29
  %390 = vmatprep.subr.mxu0 0.0
  %391 = vmatpush1.msra.mxu0 %v30
  %392 = vmatprep.subr.mxu0 0.0
  %393 = vmatpush1.msra.mxu0 %v31
  %394 = vmatprep.subr.mxu0 0.0
  %395 = vmatpush1.msra.mxu0 0.0
  %396 = vmatprep.subr.mxu0 0.0
  %397 = vmatpush1.msra.mxu0 0.0
  %398 = vmatprep.subr.mxu0 0.0
  %399 = vmatpush1.msra.mxu0 0.0
  %400 = vmatprep.subr.mxu0 0.0
  %401 = vmatpush1.msra.mxu0 0.0
  %402 = vmatprep.subr.mxu0 0.0
  %403 = vmatpush1.msra.mxu0 0.0
  %404 = vmatprep.subr.mxu0 0.0
  %405 = vmatpush1.msra.mxu0 0.0
  %406 = vmatprep.subr.mxu0 0.0
  %407 = vmatpush1.msra.mxu0 0.0
  %408 = vmatprep.subr.mxu0 0.0
  %409 = vmatpush1.msra.mxu0 0.0
  %410 = vmatprep.subr.mxu0 0.0
  %411 = vmatpush1.msra.mxu0 0.0
  %412 = vmatprep.subr.mxu0 0.0
  %413 = vmatpush1.msra.mxu0 0.0
  %414 = vmatprep.subr.mxu0 0.0
  %415 = vmatpush1.msra.mxu0 0.0
  %416 = vmatprep.subr.mxu0 0.0
  %417 = vmatpush1.msra.mxu0 0.0
  %418 = vmatprep.subr.mxu0 0.0
  %419 = vmatpush1.msra.mxu0 0.0
  %420 = vmatprep.subr.mxu0 0.0
  %421 = vmatpush1.msra.mxu0 0.0
  %422 = vmatprep.subr.mxu0 0.0
  %423 = vmatpush1.msra.mxu0 0.0
  %424 = vmatprep.subr.mxu0 0.0
  %425 = vmatpush1.msra.mxu0 0.0
  %426 = vmatprep.subr.mxu0 0.0
  %427 = vmatpush1.msra.mxu0 0.0
  %428 = vmatprep.subr.mxu0 0.0
  %429 = vmatpush1.msra.mxu0 0.0
  %430 = vmatprep.subr.mxu0 0.0
  %431 = vmatpush1.msra.mxu0 0.0
  %432 = vmatprep.subr.mxu0 0.0
  %433 = vmatpush1.msra.mxu0 0.0
  %434 = vmatprep.subr.mxu0 0.0
  %435 = vmatpush1.msra.mxu0 0.0
  %436 = vmatprep.subr.mxu0 0.0
  %437 = vmatpush1.msra.mxu0 0.0
  %438 = vmatprep.subr.mxu0 0.0
  %439 = vmatpush1.msra.mxu0 0.0
  %440 = vmatprep.subr.mxu0 0.0
  %441 = vmatpush1.msra.mxu0 0.0
  %442 = vmatprep.subr.mxu0 0.0
  %443 = vmatpush1.msra.mxu0 0.0
  %444 = vmatprep.subr.mxu0 0.0
  %445 = vmatpush1.msra.mxu0 0.0
  %446 = vmatprep.subr.mxu0 0.0
  %447 = vmatpush1.msra.mxu0 0.0
  %448 = vmatprep.subr.mxu0 0.0
  %449 = vmatpush1.msra.mxu0 0.0
  %450 = vmatprep.mubr.f32.mxu0 0.0
  %451 = vmatmul.mubr.f32.gmra.mrb[0].mxu0 %v384
  %v452 = vpop.f32.mrb[0].mxu0
  %v453 = vadd.f32 0.0, %v452
  %v454 = vpop.f32.mrb[0].mxu0
  %455 = vdwg.mxu0
  %v456 = vadd.f32 %v150, %v453
  %v457 = vxor.u32 %v456, 2147483648
  %v458 = vmul.f32 %v457, 1.442695
  %v459 = vpow.pop %v458
  %v460 = vadd.f32 %v459, 1.0
  %v461 = vrcp.pop %v460
  %v462 = vmul.f32 1.0, %v461
  %v463 = vtanh.pop %v456
  %v464 = vmul.f32 %v462, %v374
  %466 = vrot.lane.b32.xlu0 %v463, 64
  %v467 = vpop.permute.xlu0 %466
  %v469 = vmul.f32 %v462, %v467
  %471 = vrot.lane.b32.xlu0 %v469, 32
  %v472 = vpop.permute.xlu0 %471
  %v474 = vadd.f32 %v464, %v472
  %v475 = vtanh.pop %v474
  %477 = vrot.lane.b32.xlu0 %v475, 64
  %v478 = vpop.permute.xlu0 %477
  %v480 = vmul.f32 %v462, %v478
  %482 = vrot.lane.b32.xlu0 %v480, 32
  %v483 = vpop.permute.xlu0 %482
  %v484 = vsel %vm178, %v483, 0
  %486 = vmatprep.subr.mxu0 0.0
  %487 = vmatpush1.msra.mxu0 %v28
  %488 = vmatprep.subr.mxu0 0.0
  %489 = vmatpush1.msra.mxu0 %v29
  %490 = vmatprep.subr.mxu0 0.0
  %491 = vmatpush1.msra.mxu0 %v30
  %492 = vmatprep.subr.mxu0 0.0
  %493 = vmatpush1.msra.mxu0 %v31
  %494 = vmatprep.subr.mxu0 0.0
  %495 = vmatpush1.msra.mxu0 0.0
  %496 = vmatprep.subr.mxu0 0.0
  %497 = vmatpush1.msra.mxu0 0.0
  %498 = vmatprep.subr.mxu0 0.0
  %499 = vmatpush1.msra.mxu0 0.0
  %500 = vmatprep.subr.mxu0 0.0
  %501 = vmatpush1.msra.mxu0 0.0
  %502 = vmatprep.subr.mxu0 0.0
  %503 = vmatpush1.msra.mxu0 0.0
  %504 = vmatprep.subr.mxu0 0.0
  %505 = vmatpush1.msra.mxu0 0.0
  %506 = vmatprep.subr.mxu0 0.0
  %507 = vmatpush1.msra.mxu0 0.0
  %508 = vmatprep.subr.mxu0 0.0
  %509 = vmatpush1.msra.mxu0 0.0
  %510 = vmatprep.subr.mxu0 0.0
  %511 = vmatpush1.msra.mxu0 0.0
  %512 = vmatprep.subr.mxu0 0.0
  %513 = vmatpush1.msra.mxu0 0.0
  %514 = vmatprep.subr.mxu0 0.0
  %515 = vmatpush1.msra.mxu0 0.0
  %516 = vmatprep.subr.mxu0 0.0
  %517 = vmatpush1.msra.mxu0 0.0
  %518 = vmatprep.subr.mxu0 0.0
  %519 = vmatpush1.msra.mxu0 0.0
  %520 = vmatprep.subr.mxu0 0.0
  %521 = vmatpush1.msra.mxu0 0.0
  %522 = vmatprep.subr.mxu0 0.0
  %523 = vmatpush1.msra.mxu0 0.0
  %524 = vmatprep.subr.mxu0 0.0
  %525 = vmatpush1.msra.mxu0 0.0
  %526 = vmatprep.subr.mxu0 0.0
  %527 = vmatpush1.msra.mxu0 0.0
  %528 = vmatprep.subr.mxu0 0.0
  %529 = vmatpush1.msra.mxu0 0.0
  %530 = vmatprep.subr.mxu0 0.0
  %531 = vmatpush1.msra.mxu0 0.0
  %532 = vmatprep.subr.mxu0 0.0
  %533 = vmatpush1.msra.mxu0 0.0
  %534 = vmatprep.subr.mxu0 0.0
  %535 = vmatpush1.msra.mxu0 0.0
  %536 = vmatprep.subr.mxu0 0.0
  %537 = vmatpush1.msra.mxu0 0.0
  %538 = vmatprep.subr.mxu0 0.0
  %539 = vmatpush1.msra.mxu0 0.0
  %540 = vmatprep.subr.mxu0 0.0
  %541 = vmatpush1.msra.mxu0 0.0
  %542 = vmatprep.subr.mxu0 0.0
  %543 = vmatpush1.msra.mxu0 0.0
  %544 = vmatprep.subr.mxu0 0.0
  %545 = vmatpush1.msra.mxu0 0.0
  %546 = vmatprep.subr.mxu0 0.0
  %547 = vmatpush1.msra.mxu0 0.0
  %548 = vmatprep.subr.mxu0 0.0
  %549 = vmatpush1.msra.mxu0 0.0
  %550 = vmatprep.mubr.f32.mxu0 0.0
  %551 = vmatmul.mubr.f32.gmra.mrb[0].mxu0 %v484
  %v552 = vpop.f32.mrb[0].mxu0
  %v553 = vadd.f32 0.0, %v552
  %v554 = vpop.f32.mrb[0].mxu0
  %555 = vdwg.mxu0
  %v556 = vadd.f32 %v155, %v553
  %v557 = vxor.u32 %v556, 2147483648
  %v558 = vmul.f32 %v557, 1.442695
  %v559 = vpow.pop %v558
  %v560 = vadd.f32 %v559, 1.0
  %v561 = vrcp.pop %v560
  %v562 = vmul.f32 1.0, %v561
  %v563 = vtanh.pop %v556
  %v564 = vmul.f32 %v562, %v474
  %566 = vrot.lane.b32.xlu0 %v563, 64
  %v567 = vpop.permute.xlu0 %566
  %v569 = vmul.f32 %v562, %v567
  %571 = vrot.lane.b32.xlu0 %v569, 32
  %v572 = vpop.permute.xlu0 %571
  %v574 = vadd.f32 %v564, %v572
  %v575 = vtanh.pop %v574
  %577 = vrot.lane.b32.xlu0 %v575, 64
  %v578 = vpop.permute.xlu0 %577
  %v580 = vmul.f32 %v562, %v578
  %582 = vrot.lane.b32.xlu0 %v580, 32
  %v583 = vpop.permute.xlu0 %582
  %v584 = vsel %vm178, %v583, 0
  %586 = vmatprep.subr.mxu0 0.0
  %587 = vmatpush1.msra.mxu0 %v28
  %588 = vmatprep.subr.mxu0 0.0
  %589 = vmatpush1.msra.mxu0 %v29
  %590 = vmatprep.subr.mxu0 0.0
  %591 = vmatpush1.msra.mxu0 %v30
  %592 = vmatprep.subr.mxu0 0.0
  %593 = vmatpush1.msra.mxu0 %v31
  %594 = vmatprep.subr.mxu0 0.0
  %595 = vmatpush1.msra.mxu0 0.0
  %596 = vmatprep.subr.mxu0 0.0
  %597 = vmatpush1.msra.mxu0 0.0
  %598 = vmatprep.subr.mxu0 0.0
  %599 = vmatpush1.msra.mxu0 0.0
  %600 = vmatprep.subr.mxu0 0.0
  %601 = vmatpush1.msra.mxu0 0.0
  %602 = vmatprep.subr.mxu0 0.0
  %603 = vmatpush1.msra.mxu0 0.0
  %604 = vmatprep.subr.mxu0 0.0
  %605 = vmatpush1.msra.mxu0 0.0
  %606 = vmatprep.subr.mxu0 0.0
  %607 = vmatpush1.msra.mxu0 0.0
  %608 = vmatprep.subr.mxu0 0.0
  %609 = vmatpush1.msra.mxu0 0.0
  %610 = vmatprep.subr.mxu0 0.0
  %611 = vmatpush1.msra.mxu0 0.0
  %612 = vmatprep.subr.mxu0 0.0
  %613 = vmatpush1.msra.mxu0 0.0
  %614 = vmatprep.subr.mxu0 0.0
  %615 = vmatpush1.msra.mxu0 0.0
  %616 = vmatprep.subr.mxu0 0.0
  %617 = vmatpush1.msra.mxu0 0.0
  %618 = vmatprep.subr.mxu0 0.0
  %619 = vmatpush1.msra.mxu0 0.0
  %620 = vmatprep.subr.mxu0 0.0
  %621 = vmatpush1.msra.mxu0 0.0
  %622 = vmatprep.subr.mxu0 0.0
  %623 = vmatpush1.msra.mxu0 0.0
  %624 = vmatprep.subr.mxu0 0.0
  %625 = vmatpush1.msra.mxu0 0.0
  %626 = vmatprep.subr.mxu0 0.0
  %627 = vmatpush1.msra.mxu0 0.0
  %628 = vmatprep.subr.mxu0 0.0
  %629 = vmatpush1.msra.mxu0 0.0
  %630 = vmatprep.subr.mxu0 0.0
  %631 = vmatpush1.msra.mxu0 0.0
  %632 = vmatprep.subr.mxu0 0.0
  %633 = vmatpush1.msra.mxu0 0.0
  %634 = vmatprep.subr.mxu0 0.0
  %635 = vmatpush1.msra.mxu0 0.0
  %636 = vmatprep.subr.mxu0 0.0
  %637 = vmatpush1.msra.mxu0 0.0
  %638 = vmatprep.subr.mxu0 0.0
  %639 = vmatpush1.msra.mxu0 0.0
  %640 = vmatprep.subr.mxu0 0.0
  %641 = vmatpush1.msra.mxu0 0.0
  %642 = vmatprep.subr.mxu0 0.0
  %643 = vmatpush1.msra.mxu0 0.0
  %644 = vmatprep.subr.mxu0 0.0
  %645 = vmatpush1.msra.mxu0 0.0
  %646 = vmatprep.subr.mxu0 0.0
  %647 = vmatpush1.msra.mxu0 0.0
  %648 = vmatprep.subr.mxu0 0.0
  %649 = vmatpush1.msra.mxu0 0.0
  %650 = vmatprep.mubr.f32.mxu0 0.0
  %651 = vmatmul.mubr.f32.gmra.mrb[0].mxu0 %v584
  %v652 = vpop.f32.mrb[0].mxu0
  %v653 = vadd.f32 0.0, %v652
  %v654 = vpop.f32.mrb[0].mxu0
  %655 = vdwg.mxu0
  %v656 = vadd.f32 %v160, %v653
  %v657 = vxor.u32 %v656, 2147483648
  %v658 = vmul.f32 %v657, 1.442695
  %v659 = vpow.pop %v658
  %v660 = vadd.f32 %v659, 1.0
  %v661 = vrcp.pop %v660
  %v662 = vmul.f32 1.0, %v661
  %v663 = vtanh.pop %v656
  %v664 = vmul.f32 %v662, %v574
  %666 = vrot.lane.b32.xlu0 %v663, 64
  %v667 = vpop.permute.xlu0 %666
  %v669 = vmul.f32 %v662, %v667
  %671 = vrot.lane.b32.xlu0 %v669, 32
  %v672 = vpop.permute.xlu0 %671
  %v674 = vadd.f32 %v664, %v672
  %v675 = vtanh.pop %v674
  %677 = vrot.lane.b32.xlu0 %v675, 64
  %v678 = vpop.permute.xlu0 %677
  %v680 = vmul.f32 %v662, %v678
  %682 = vrot.lane.b32.xlu0 %v680, 32
  %v683 = vpop.permute.xlu0 %682
  %v684 = vsel %vm178, %v683, 0
  %686 = vmatprep.subr.mxu0 0.0
  %687 = vmatpush1.msra.mxu0 %v28
  %688 = vmatprep.subr.mxu0 0.0
  %689 = vmatpush1.msra.mxu0 %v29
  %690 = vmatprep.subr.mxu0 0.0
  %691 = vmatpush1.msra.mxu0 %v30
  %692 = vmatprep.subr.mxu0 0.0
  %693 = vmatpush1.msra.mxu0 %v31
  %694 = vmatprep.subr.mxu0 0.0
  %695 = vmatpush1.msra.mxu0 0.0
  %696 = vmatprep.subr.mxu0 0.0
  %697 = vmatpush1.msra.mxu0 0.0
  %698 = vmatprep.subr.mxu0 0.0
  %699 = vmatpush1.msra.mxu0 0.0
  %700 = vmatprep.subr.mxu0 0.0
  %701 = vmatpush1.msra.mxu0 0.0
  %702 = vmatprep.subr.mxu0 0.0
  %703 = vmatpush1.msra.mxu0 0.0
  %704 = vmatprep.subr.mxu0 0.0
  %705 = vmatpush1.msra.mxu0 0.0
  %706 = vmatprep.subr.mxu0 0.0
  %707 = vmatpush1.msra.mxu0 0.0
  %708 = vmatprep.subr.mxu0 0.0
  %709 = vmatpush1.msra.mxu0 0.0
  %710 = vmatprep.subr.mxu0 0.0
  %711 = vmatpush1.msra.mxu0 0.0
  %712 = vmatprep.subr.mxu0 0.0
  %713 = vmatpush1.msra.mxu0 0.0
  %714 = vmatprep.subr.mxu0 0.0
  %715 = vmatpush1.msra.mxu0 0.0
  %716 = vmatprep.subr.mxu0 0.0
  %717 = vmatpush1.msra.mxu0 0.0
  %718 = vmatprep.subr.mxu0 0.0
  %719 = vmatpush1.msra.mxu0 0.0
  %720 = vmatprep.subr.mxu0 0.0
  %721 = vmatpush1.msra.mxu0 0.0
  %722 = vmatprep.subr.mxu0 0.0
  %723 = vmatpush1.msra.mxu0 0.0
  %724 = vmatprep.subr.mxu0 0.0
  %725 = vmatpush1.msra.mxu0 0.0
  %726 = vmatprep.subr.mxu0 0.0
  %727 = vmatpush1.msra.mxu0 0.0
  %728 = vmatprep.subr.mxu0 0.0
  %729 = vmatpush1.msra.mxu0 0.0
  %730 = vmatprep.subr.mxu0 0.0
  %731 = vmatpush1.msra.mxu0 0.0
  %732 = vmatprep.subr.mxu0 0.0
  %733 = vmatpush1.msra.mxu0 0.0
  %734 = vmatprep.subr.mxu0 0.0
  %735 = vmatpush1.msra.mxu0 0.0
  %736 = vmatprep.subr.mxu0 0.0
  %737 = vmatpush1.msra.mxu0 0.0
  %738 = vmatprep.subr.mxu0 0.0
  %739 = vmatpush1.msra.mxu0 0.0
  %740 = vmatprep.subr.mxu0 0.0
  %741 = vmatpush1.msra.mxu0 0.0
  %742 = vmatprep.subr.mxu0 0.0
  %743 = vmatpush1.msra.mxu0 0.0
  %744 = vmatprep.subr.mxu0 0.0
  %745 = vmatpush1.msra.mxu0 0.0
  %746 = vmatprep.subr.mxu0 0.0
  %747 = vmatpush1.msra.mxu0 0.0
  %748 = vmatprep.subr.mxu0 0.0
  %749 = vmatpush1.msra.mxu0 0.0
  %750 = vmatprep.mubr.f32.mxu0 0.0
  %751 = vmatmul.mubr.f32.gmra.mrb[0].mxu0 %v684
  %v752 = vpop.f32.mrb[0].mxu0
  %v753 = vadd.f32 0.0, %v752
  %v754 = vpop.f32.mrb[0].mxu0
  %755 = vdwg.mxu0
  %v756 = vadd.f32 %v165, %v753
  %v757 = vxor.u32 %v756, 2147483648
  %v758 = vmul.f32 %v757, 1.442695
  %v759 = vpow.pop %v758
  %v760 = vadd.f32 %v759, 1.0
  %v761 = vrcp.pop %v760
  %v762 = vmul.f32 1.0, %v761
  %v763 = vtanh.pop %v756
  %v764 = vmul.f32 %v762, %v674
  %766 = vrot.lane.b32.xlu0 %v763, 64
  %v767 = vpop.permute.xlu0 %766
  %v769 = vmul.f32 %v762, %v767
  %771 = vrot.lane.b32.xlu0 %v769, 32
  %v772 = vpop.permute.xlu0 %771
  %v774 = vadd.f32 %v764, %v772
  %v775 = vtanh.pop %v774
  %777 = vrot.lane.b32.xlu0 %v775, 64
  %v778 = vpop.permute.xlu0 %777
  %v780 = vmul.f32 %v762, %v778
  %782 = vrot.lane.b32.xlu0 %v780, 32
  %v783 = vpop.permute.xlu0 %782
  %v784 = vsel %vm178, %v783, 0
  %786 = vmatprep.subr.mxu0 0.0
  %787 = vmatpush1.msra.mxu0 %v28
  %788 = vmatprep.subr.mxu0 0.0
  %789 = vmatpush1.msra.mxu0 %v29
  %790 = vmatprep.subr.mxu0 0.0
  %791 = vmatpush1.msra.mxu0 %v30
  %792 = vmatprep.subr.mxu0 0.0
  %793 = vmatpush1.msra.mxu0 %v31
  %794 = vmatprep.subr.mxu0 0.0
  %795 = vmatpush1.msra.mxu0 0.0
  %796 = vmatprep.subr.mxu0 0.0
  %797 = vmatpush1.msra.mxu0 0.0
  %798 = vmatprep.subr.mxu0 0.0
  %799 = vmatpush1.msra.mxu0 0.0
  %800 = vmatprep.subr.mxu0 0.0
  %801 = vmatpush1.msra.mxu0 0.0
  %802 = vmatprep.subr.mxu0 0.0
  %803 = vmatpush1.msra.mxu0 0.0
  %804 = vmatprep.subr.mxu0 0.0
  %805 = vmatpush1.msra.mxu0 0.0
  %806 = vmatprep.subr.mxu0 0.0
  %807 = vmatpush1.msra.mxu0 0.0
  %808 = vmatprep.subr.mxu0 0.0
  %809 = vmatpush1.msra.mxu0 0.0
  %810 = vmatprep.subr.mxu0 0.0
  %811 = vmatpush1.msra.mxu0 0.0
  %812 = vmatprep.subr.mxu0 0.0
  %813 = vmatpush1.msra.mxu0 0.0
  %814 = vmatprep.subr.mxu0 0.0
  %815 = vmatpush1.msra.mxu0 0.0
  %816 = vmatprep.subr.mxu0 0.0
  %817 = vmatpush1.msra.mxu0 0.0
  %818 = vmatprep.subr.mxu0 0.0
  %819 = vmatpush1.msra.mxu0 0.0
  %820 = vmatprep.subr.mxu0 0.0
  %821 = vmatpush1.msra.mxu0 0.0
  %822 = vmatprep.subr.mxu0 0.0
  %823 = vmatpush1.msra.mxu0 0.0
  %824 = vmatprep.subr.mxu0 0.0
  %825 = vmatpush1.msra.mxu0 0.0
  %826 = vmatprep.subr.mxu0 0.0
  %827 = vmatpush1.msra.mxu0 0.0
  %828 = vmatprep.subr.mxu0 0.0
  %829 = vmatpush1.msra.mxu0 0.0
  %830 = vmatprep.subr.mxu0 0.0
  %831 = vmatpush1.msra.mxu0 0.0
  %832 = vmatprep.subr.mxu0 0.0
  %833 = vmatpush1.msra.mxu0 0.0
  %834 = vmatprep.subr.mxu0 0.0
  %835 = vmatpush1.msra.mxu0 0.0
  %836 = vmatprep.subr.mxu0 0.0
  %837 = vmatpush1.msra.mxu0 0.0
  %838 = vmatprep.subr.mxu0 0.0
  %839 = vmatpush1.msra.mxu0 0.0
  %840 = vmatprep.subr.mxu0 0.0
  %841 = vmatpush1.msra.mxu0 0.0
  %842 = vmatprep.subr.mxu0 0.0
  %843 = vmatpush1.msra.mxu0 0.0
  %844 = vmatprep.subr.mxu0 0.0
  %845 = vmatpush1.msra.mxu0 0.0
  %846 = vmatprep.subr.mxu0 0.0
  %847 = vmatpush1.msra.mxu0 0.0
  %848 = vmatprep.subr.mxu0 0.0
  %849 = vmatpush1.msra.mxu0 0.0
  %850 = vmatprep.mubr.f32.mxu0 0.0
  %851 = vmatmul.mubr.f32.gmra.mrb[0].mxu0 %v784
  %v852 = vpop.f32.mrb[0].mxu0
  %v853 = vadd.f32 0.0, %v852
  %v854 = vpop.f32.mrb[0].mxu0
  %855 = vdwg.mxu0
  %v856 = vadd.f32 %v170, %v853
  %v857 = vxor.u32 %v856, 2147483648
  %v858 = vmul.f32 %v857, 1.442695
  %v859 = vpow.pop %v858
  %v860 = vadd.f32 %v859, 1.0
  %v861 = vrcp.pop %v860
  %v862 = vmul.f32 1.0, %v861
  %v863 = vtanh.pop %v856
  %v864 = vmul.f32 %v862, %v774
  %866 = vrot.lane.b32.xlu0 %v863, 64
  %v867 = vpop.permute.xlu0 %866
  %v869 = vmul.f32 %v862, %v867
  %871 = vrot.lane.b32.xlu0 %v869, 32
  %v872 = vpop.permute.xlu0 %871
  %v874 = vadd.f32 %v864, %v872
  %v875 = vtanh.pop %v874
  %877 = vrot.lane.b32.xlu0 %v875, 64
  %v878 = vpop.permute.xlu0 %877
  %v880 = vmul.f32 %v862, %v878
  %882 = vrot.lane.b32.xlu0 %v880, 32
  %v883 = vpop.permute.xlu0 %882
  %v884 = vsel %vm178, %v883, 0
  %886 = vmatprep.subr.mxu0 0.0
  %887 = vmatpush1.msra.mxu0 %v28
  %888 = vmatprep.subr.mxu0 0.0
  %889 = vmatpush1.msra.mxu0 %v29
  %890 = vmatprep.subr.mxu0 0.0
  %891 = vmatpush1.msra.mxu0 %v30
  %892 = vmatprep.subr.mxu0 0.0
  %893 = vmatpush1.msra.mxu0 %v31
  %894 = vmatprep.subr.mxu0 0.0
  %895 = vmatpush1.msra.mxu0 0.0
  %896 = vmatprep.subr.mxu0 0.0
  %897 = vmatpush1.msra.mxu0 0.0
  %898 = vmatprep.subr.mxu0 0.0
  %899 = vmatpush1.msra.mxu0 0.0
  %900 = vmatprep.subr.mxu0 0.0
  %901 = vmatpush1.msra.mxu0 0.0
  %902 = vmatprep.subr.mxu0 0.0
  %903 = vmatpush1.msra.mxu0 0.0
  %904 = vmatprep.subr.mxu0 0.0
  %905 = vmatpush1.msra.mxu0 0.0
  %906 = vmatprep.subr.mxu0 0.0
  %907 = vmatpush1.msra.mxu0 0.0
  %908 = vmatprep.subr.mxu0 0.0
  %909 = vmatpush1.msra.mxu0 0.0
  %910 = vmatprep.subr.mxu0 0.0
  %911 = vmatpush1.msra.mxu0 0.0
  %912 = vmatprep.subr.mxu0 0.0
  %913 = vmatpush1.msra.mxu0 0.0
  %914 = vmatprep.subr.mxu0 0.0
  %915 = vmatpush1.msra.mxu0 0.0
  %916 = vmatprep.subr.mxu0 0.0
  %917 = vmatpush1.msra.mxu0 0.0
  %918 = vmatprep.subr.mxu0 0.0
  %919 = vmatpush1.msra.mxu0 0.0
  %920 = vmatprep.subr.mxu0 0.0
  %921 = vmatpush1.msra.mxu0 0.0
  %922 = vmatprep.subr.mxu0 0.0
  %923 = vmatpush1.msra.mxu0 0.0
  %924 = vmatprep.subr.mxu0 0.0
  %925 = vmatpush1.msra.mxu0 0.0
  %926 = vmatprep.subr.mxu0 0.0
  %927 = vmatpush1.msra.mxu0 0.0
  %928 = vmatprep.subr.mxu0 0.0
  %929 = vmatpush1.msra.mxu0 0.0
  %930 = vmatprep.subr.mxu0 0.0
  %931 = vmatpush1.msra.mxu0 0.0
  %932 = vmatprep.subr.mxu0 0.0
  %933 = vmatpush1.msra.mxu0 0.0
  %934 = vmatprep.subr.mxu0 0.0
  %935 = vmatpush1.msra.mxu0 0.0
  %936 = vmatprep.subr.mxu0 0.0
  %937 = vmatpush1.msra.mxu0 0.0
  %938 = vmatprep.subr.mxu0 0.0
  %939 = vmatpush1.msra.mxu0 0.0
  %940 = vmatprep.subr.mxu0 0.0
  %941 = vmatpush1.msra.mxu0 0.0
  %942 = vmatprep.subr.mxu0 0.0
  %943 = vmatpush1.msra.mxu0 0.0
  %944 = vmatprep.subr.mxu0 0.0
  %945 = vmatpush1.msra.mxu0 0.0
  %946 = vmatprep.subr.mxu0 0.0
  %947 = vmatpush1.msra.mxu0 0.0
  %948 = vmatprep.subr.mxu0 0.0
  %949 = vmatpush1.msra.mxu0 0.0
  %950 = vmatprep.mubr.f32.mxu0 0.0
  %951 = vmatmul.mubr.f32.gmra.mrb[0].mxu0 %v884
  %v952 = vpop.f32.mrb[0].mxu0
  %v953 = vadd.f32 0.0, %v952
  %v954 = vpop.f32.mrb[0].mxu0
  %955 = vdwg.mxu0
  %v956 = vadd.f32 %v175, %v953
  %v957 = vxor.u32 %v956, 2147483648
  %v958 = vmul.f32 %v957, 1.442695
  %v959 = vpow.pop %v958
  %v960 = vadd.f32 %v959, 1.0
  %v961 = vrcp.pop %v960
  %v962 = vmul.f32 1.0, %v961
  %v963 = vtanh.pop %v956
  %v964 = vmul.f32 %v962, %v874
  %966 = vrot.lane.b32.xlu0 %v963, 64
  %v967 = vpop.permute.xlu0 %966
  %v969 = vmul.f32 %v962, %v967
  %971 = vrot.lane.b32.xlu0 %v969, 32
  %v972 = vpop.permute.xlu0 %971
  %v974 = vadd.f32 %v964, %v972
  %v975 = vtanh.pop %v974
  %977 = vrot.lane.b32.xlu0 %v975, 64
  %v978 = vpop.permute.xlu0 %977
  %v980 = vmul.f32 %v962, %v978
  %v981 = vlaneseq
  %v982 = vshrl.u32 %v981, 7
  %v983 = vsub.s32 0, %v982
  %v984 = vrot.slane %v37, %v983
  %986 = vrot.lane.b32.xlu0 %v980, 32
  %v987 = vpop.permute.xlu0 %986
  %v988 = vsel %vm178, %v987, 0
  %990 = vmatprep.subr.mxu0 0.0
  %991 = vmatpush1.msra.mxu0 %v33
  %992 = vmatprep.subr.mxu0 0.0
  %993 = vmatpush1.msra.mxu0 %v34
  %994 = vmatprep.subr.mxu0 0.0
  %995 = vmatpush1.msra.mxu0 %v35
  %996 = vmatprep.subr.mxu0 0.0
  %997 = vmatpush1.msra.mxu0 %v36
  %998 = vmatprep.subr.mxu0 0.0
  %999 = vmatpush1.msra.mxu0 0.0
  %1000 = vmatprep.subr.mxu0 0.0
  %1001 = vmatpush1.msra.mxu0 0.0
  %1002 = vmatprep.subr.mxu0 0.0
  %1003 = vmatpush1.msra.mxu0 0.0
  %1004 = vmatprep.subr.mxu0 0.0
  %1005 = vmatpush1.msra.mxu0 0.0
  %1006 = vmatprep.subr.mxu0 0.0
  %1007 = vmatpush1.msra.mxu0 0.0
  %1008 = vmatprep.subr.mxu0 0.0
  %1009 = vmatpush1.msra.mxu0 0.0
  %1010 = vmatprep.subr.mxu0 0.0
  %1011 = vmatpush1.msra.mxu0 0.0
  %1012 = vmatprep.subr.mxu0 0.0
  %1013 = vmatpush1.msra.mxu0 0.0
  %1014 = vmatprep.subr.mxu0 0.0
  %1015 = vmatpush1.msra.mxu0 0.0
  %1016 = vmatprep.subr.mxu0 0.0
  %1017 = vmatpush1.msra.mxu0 0.0
  %1018 = vmatprep.subr.mxu0 0.0
  %1019 = vmatpush1.msra.mxu0 0.0
  %1020 = vmatprep.subr.mxu0 0.0
  %1021 = vmatpush1.msra.mxu0 0.0
  %1022 = vmatprep.subr.mxu0 0.0
  %1023 = vmatpush1.msra.mxu0 0.0
  %1024 = vmatprep.subr.mxu0 0.0
  %1025 = vmatpush1.msra.mxu0 0.0
  %1026 = vmatprep.subr.mxu0 0.0
  %1027 = vmatpush1.msra.mxu0 0.0
  %1028 = vmatprep.subr.mxu0 0.0
  %1029 = vmatpush1.msra.mxu0 0.0
  %1030 = vmatprep.subr.mxu0 0.0
  %1031 = vmatpush1.msra.mxu0 0.0
  %1032 = vmatprep.subr.mxu0 0.0
  %1033 = vmatpush1.msra.mxu0 0.0
  %1034 = vmatprep.subr.mxu0 0.0
  %1035 = vmatpush1.msra.mxu0 0.0
  %1036 = vmatprep.subr.mxu0 0.0
  %1037 = vmatpush1.msra.mxu0 0.0
  %1038 = vmatprep.subr.mxu0 0.0
  %1039 = vmatpush1.msra.mxu0 0.0
  %1040 = vmatprep.subr.mxu0 0.0
  %1041 = vmatpush1.msra.mxu0 0.0
  %1042 = vmatprep.subr.mxu0 0.0
  %1043 = vmatpush1.msra.mxu0 0.0
  %1044 = vmatprep.subr.mxu0 0.0
  %1045 = vmatpush1.msra.mxu0 0.0
  %1046 = vmatprep.subr.mxu0 0.0
  %1047 = vmatpush1.msra.mxu0 0.0
  %1048 = vmatprep.subr.mxu0 0.0
  %1049 = vmatpush1.msra.mxu0 0.0
  %1050 = vmatprep.subr.mxu0 0.0
  %1051 = vmatpush1.msra.mxu0 0.0
  %1052 = vmatprep.subr.mxu0 0.0
  %1053 = vmatpush1.msra.mxu0 0.0
  %1054 = vmatprep.mubr.f32.mxu0 0.0
  %1055 = vmatmul.mubr.f32.gmra.mrb[0].mxu0 %v284
  %v1056 = vpop.f32.mrb[0].mxu0
  %v1057 = vadd.f32 %v984, %v1056
  %v1058 = vpop.f32.mrb[0].mxu0
  %1059 = vmatprep.mubr.f32.mxu0 0.0
  %1060 = vmatmul.mubr.f32.gmra.mrb[0].mxu0 %v384
  %v1061 = vpop.f32.mrb[0].mxu0
  %v1062 = vadd.f32 %v984, %v1061
  %v1063 = vpop.f32.mrb[0].mxu0
  %1064 = vmatprep.mubr.f32.mxu0 0.0
  %1065 = vmatmul.mubr.f32.gmra.mrb[0].mxu0 %v484
  %v1066 = vpop.f32.mrb[0].mxu0
  %v1067 = vadd.f32 %v984, %v1066
  %v1068 = vpop.f32.mrb[0].mxu0
  %1069 = vmatprep.mubr.f32.mxu0 0.0
  %1070 = vmatmul.mubr.f32.gmra.mrb[0].mxu0 %v584
  %v1071 = vpop.f32.mrb[0].mxu0
  %v1072 = vadd.f32 %v984, %v1071
  %v1073 = vpop.f32.mrb[0].mxu0
  %1074 = vmatprep.mubr.f32.mxu0 0.0
  %1075 = vmatmul.mubr.f32.gmra.mrb[0].mxu0 %v684
  %v1076 = vpop.f32.mrb[0].mxu0
  %v1077 = vadd.f32 %v984, %v1076
  %v1078 = vpop.f32.mrb[0].mxu0
  %1079 = vmatprep.mubr.f32.mxu0 0.0
  %1080 = vmatmul.mubr.f32.gmra.mrb[0].mxu0 %v784
  %v1081 = vpop.f32.mrb[0].mxu0
  %v1082 = vadd.f32 %v984, %v1081
  %v1083 = vpop.f32.mrb[0].mxu0
  %1084 = vmatprep.mubr.f32.mxu0 0.0
  %1085 = vmatmul.mubr.f32.gmra.mrb[0].mxu0 %v884
  %v1086 = vpop.f32.mrb[0].mxu0
  %v1087 = vadd.f32 %v984, %v1086
  %v1088 = vpop.f32.mrb[0].mxu0
  %1089 = vmatprep.mubr.f32.mxu0 0.0
  %1090 = vmatmul.mubr.f32.gmra.mrb[0].mxu0 %v988
  %v1091 = vpop.f32.mrb[0].mxu0
  %v1092 = vadd.f32 %v984, %v1091
  %v1093 = vpop.f32.mrb[0].mxu0
  %1094 = vdwg.mxu0
  %vm1095 = vcmask 64512
  %1096 = vst.msk [vmem:[%s4] sm:$0xff] %vm1095, %v1057
  %1097 = vst.msk [vmem:[%s4 + $0x8] sm:$0xff] %vm1095, %v1062
  %1098 = vst.msk [vmem:[%s4 + $0x10] sm:$0xff] %vm1095, %v1067
  %1099 = vst.msk [vmem:[%s4 + $0x18] sm:$0xff] %vm1095, %v1072
  %1100 = vst.msk [vmem:[%s4 + $0x20] sm:$0xff] %vm1095, %v1077
  %1101 = vst.msk [vmem:[%s4 + $0x28] sm:$0xff] %vm1095, %v1082
  %1102 = vst.msk [vmem:[%s4 + $0x30] sm:$0xff] %vm1095, %v1087
  %1103 = vst.msk [vmem:[%s4 + $0x38] sm:$0xff] %vm1095, %v1092
  %1105 = vrot.lane.b32.xlu0 %v974, 64
  %v1106 = vpop.permute.xlu0 %1105
  %1107 = vrot.lane.b32.xlu0 %v1106, 32
  %v1108 = vpop.permute.xlu0 %1107
  %1111 = vst.msk [vmem:[%s5] sm:$0xff] %vm178, %v987
  %1112 = vst.msk [vmem:[%s5 + $0x8] sm:$0xff] %vm178, %v1108
  // Predicated region
  $region18: #{my_lstm_forward.1} parent=0 // pred_check
    _
  $region19: #{my_lstm_forward.1} parent=0 // pred_check_branch
    %1114 = sbr.rel (0) target = $region21
  $region20: #{my_lstm_forward.1} parent=0 // pred_region
    _
  $region21: #{my_lstm_forward.1} parent=0 // pred_fallthru
    _
  // Predicated region
  $region22: #{my_lstm_forward.1} parent=0 // pred_check
    _
  $region23: #{my_lstm_forward.1} parent=0 // pred_check_branch
    %1116 = sbr.rel (0) target = $region25
  $region24: #{my_lstm_forward.1} parent=0 // pred_region
    _
  $region25: #{my_lstm_forward.1} parent=0 // pred_fallthru
    _
  // Predicated region
  $region26: #{my_lstm_forward.1} parent=0 // pred_check
    _
  $region27: #{my_lstm_forward.1} parent=0 // pred_check_branch
    %1118 = sbr.rel (0) target = $region29
  $region28: #{my_lstm_forward.1} parent=0 // pred_region
    _
  $region29: #{my_lstm_forward.1} parent=0 // pred_fallthru
    _
  // Predicated region
  $region30: #{my_lstm_forward.1} parent=0 // pred_check
    _
  $region31: #{my_lstm_forward.1} parent=0 // pred_check_branch
    %1120 = sbr.rel (0) target = $region33
  $region32: #{my_lstm_forward.1} parent=0 // pred_region
    _
  $region33: #{my_lstm_forward.1} parent=0 // pred_fallthru
    _

</llo_original>
